<compile_context>
chip_gen: v7x
topology: tpu7x:2x2x1
jax: 0.10.0
libtpu: 0.0.40
codegen_flags: <defaults>
</compile_context>

<pallas_src>
import functools

import jax
import jax.numpy as jnp
from jax.experimental import pallas as pl
from jax.experimental.pallas import tpu as pltpu

LANE = 128
SUBLANE = 8


def _cdiv(a, b):
    return (a + b - 1) // b


def _round_up(n, m):
    return _cdiv(n, m) * m


# ---------------------------------------------------------------------------
# Kernel
# ---------------------------------------------------------------------------
def ffn_kernel(x_ref, w0_ref, b0_ref, w1_ref, b1_ref, w2_ref, b2_ref, o_ref):
    # Layer 0: Linear + ReLU.  Weights are bf16, accumulation stays f32.
    x = x_ref[...].astype(w0_ref.dtype)
    h = jnp.dot(x, w0_ref[...], preferred_element_type=jnp.float32)
    h = jnp.maximum(h + b0_ref[...], 0.0)
    # Layer 1 (hidden): Linear + ReLU.
    h = jnp.dot(h.astype(w1_ref.dtype), w1_ref[...],
                preferred_element_type=jnp.float32)
    h = jnp.maximum(h + b1_ref[...], 0.0)
    # Output layer: Linear + Sigmoid.
    h = jnp.dot(h.astype(w2_ref.dtype), w2_ref[...],
                preferred_element_type=jnp.float32)
    h = h + b2_ref[...]
    # sigmoid(h) = 1 / (1 + exp(-h)); exp and the approx reciprocal both run on
    # the otherwise-idle EUP slot.
    o_ref[...] = pl.reciprocal(1.0 + jnp.exp(-h), approx=True).astype(o_ref.dtype)


# ---------------------------------------------------------------------------
# Parameters / padding (done once, outside the hot path)
# ---------------------------------------------------------------------------
def init_params(key, input_dim, hidden_dim, output_dim):
    """Deterministic init mimicking nn.Linear default (uniform +/- 1/sqrt(fan_in)).

    Weights are stored (fan_in, fan_out) so the forward is x @ w + b, which is
    numerically identical to PyTorch's x @ W.T + b.
    """
    def linear(key, fan_in, fan_out):
        kw, kb = jax.random.split(key)
        bound = 1.0 / jnp.sqrt(fan_in)
        w = jax.random.uniform(kw, (fan_in, fan_out), jnp.float32, -bound, bound)
        b = jax.random.uniform(kb, (1, fan_out), jnp.float32, -bound, bound)
        return w, b

    k0, k1, k2 = jax.random.split(key, 3)
    w0, b0 = linear(k0, input_dim, hidden_dim)   # Linear(input_dim, hidden_dim)
    w1, b1 = linear(k1, hidden_dim, hidden_dim)  # Linear(hidden_dim, hidden_dim)
    w2, b2 = linear(k2, hidden_dim, output_dim)  # Linear(hidden_dim, output_dim)
    return (w0, b0, w1, b1, w2, b2)


def pad_params(params, lane=LANE, weight_dtype=jnp.bfloat16):
    """Zero-pad feature dims to lane multiples and cast weights for the MXU.

    Zero rows/cols are mathematically inert; padded output columns give
    sigmoid(0)=0.5 and are sliced off.  Weights go to bf16 (MXU-native on
    v5e/v6e/v7x, half the VMEM/HBM traffic); biases stay f32 (added to the f32
    accumulator).
    """
    w0, b0, w1, b1, w2, b2 = params
    in_d, hid_d = w0.shape
    out_d = w2.shape[1]
    in_p, hid_p, out_p = (_round_up(d, lane) for d in (in_d, hid_d, out_d))

    def pad_w(w, rows, cols):
        w = jnp.pad(w, ((0, rows - w.shape[0]), (0, cols - w.shape[1])))
        return w.astype(weight_dtype)

    def pad_b(b, cols):
        return jnp.pad(b, ((0, 0), (0, cols - b.shape[1]))).astype(jnp.float32)

    padded = (pad_w(w0, in_p, hid_p), pad_b(b0, hid_p),
              pad_w(w1, hid_p, hid_p), pad_b(b1, hid_p),
              pad_w(w2, hid_p, out_p), pad_b(b2, out_p))
    return padded, (in_d, hid_d, out_d)


def pad_inputs(x, padded_input_dim):
    """Lane-pad activation features once, upstream of the per-call hot path."""
    pad = padded_input_dim - x.shape[1]
    if pad == 0:
        return x
    return jnp.pad(x, ((0, 0), (0, pad)))


# ---------------------------------------------------------------------------
# Capability probes (run once, outside jit)
# ---------------------------------------------------------------------------
@functools.lru_cache(maxsize=None)
def _single_buffer_supported():
    """Probe whether pipeline_mode=pl.Buffered(1) (single-buffered resident
    blocks) lowers and runs correctly on this jax/libtpu combination."""
    if not hasattr(pl, "Buffered"):
        return False

    def _probe_kernel(x_ref, w_ref, o_ref):
        o_ref[...] = x_ref[...] + w_ref[...]

    try:
        fn = pl.pallas_call(
            _probe_kernel,
            out_shape=jax.ShapeDtypeStruct((16, 128), jnp.float32),
            grid=(2,),
            in_specs=[
                pl.BlockSpec((8, 128), lambda i: (i, 0)),
                pl.BlockSpec((8, 128), lambda i: (0, 0),
                             pipeline_mode=pl.Buffered(1)),
            ],
            out_specs=pl.BlockSpec((8, 128), lambda i: (i, 0)),
        )
        res = fn(jnp.zeros((16, 128), jnp.float32),
                 jnp.ones((8, 128), jnp.float32))
        jax.block_until_ready(res)
        return bool(jnp.allclose(res, 1.0))
    except Exception:  # pragma: no cover - depends on jax/libtpu version
        return False


@functools.lru_cache(maxsize=None)
def _vmem_budget_bytes():
    """Generation-aware VMEM budget: physical capacity minus headroom for Mosaic
    internal scratch (v7x 64 MiB -> ~48 MiB, v5e/v6e 128 MiB -> ~96 MiB)."""
    try:
        capacity = int(pltpu.get_tpu_info().vmem_capacity_bytes)
    except Exception:  # pragma: no cover - older jax / query unavailable
        capacity = 64 << 20  # conservative (v7x-sized) fallback
    return capacity - max(16 << 20, capacity // 4)


# ---------------------------------------------------------------------------
# Forward pass
# ---------------------------------------------------------------------------
@functools.partial(jax.jit,
                   static_argnames=("orig_dims", "block_b", "single_buffer"))
def _ffn_forward(x, padded_params, orig_dims, block_b, single_buffer):
    w0, b0, w1, b1, w2, b2 = padded_params
    in_d, hid_d, out_d = orig_dims
    in_p, hid_p = w0.shape
    out_p = w2.shape[1]
    B = x.shape[0]
    dtype = x.dtype

    if x.shape[1] != in_p:
        # Fallback only; keep activations lane-padded upstream (pad_inputs) so
        # this extra full pass over x never runs in the hot path.
        x = jnp.pad(x, ((0, 0), (0, in_p - x.shape[1])))

    # Balanced batch tiling: padding waste bounded by <8 rows per tile, and at
    # least 2 grid steps (when B allows it) so the "parallel" axis can actually
    # shard across v7x's two TensorCores.
    n_tiles = _cdiv(B, block_b)
    if n_tiles == 1 and B > SUBLANE:
        n_tiles = 2
    tb = _round_up(_cdiv(B, n_tiles), SUBLANE)
    b_pad = n_tiles * tb
    if b_pad != B:
        x = jnp.pad(x, ((0, b_pad - B), (0, 0)))
    grid = (n_tiles,)

    # Weights/biases: constant block index -> VMEM-resident across grid steps.
    # Single-buffer them when supported (no re-DMA happens anyway; this just
    # halves their VMEM footprint, which matters under v7x's 64 MiB).
    if single_buffer:
        def resident(shape):
            return pl.BlockSpec(shape, lambda i: (0, 0),
                                pipeline_mode=pl.Buffered(1))
    else:
        def resident(shape):
            return pl.BlockSpec(shape, lambda i: (0, 0))

    # VMEM accounting: resident weights/biases (+double-buffer factor when
    # Buffered(1) is unavailable), double-buffered x/out tiles, f32 activations.
    weight_bytes = sum(int(a.size) * a.dtype.itemsize for a in padded_params)
    resident_bytes = weight_bytes * (1 if single_buffer else 2)
    tile_bytes = 4 * tb * (2 * (in_p + out_p) + 2 * hid_p)
    needed = resident_bytes + tile_bytes + (2 << 20)
    budget = _vmem_budget_bytes()
    if needed > budget:
        raise ValueError(
            f"Resident-weight FFN kernel needs ~{needed >> 20} MiB VMEM but the "
            f"budget on this TPU is {budget >> 20} MiB; shrink block_b or "
            "implement hidden/K tiling (see TODO(synk) in the module header).")
    vmem_limit = int(min(max(needed, 32 << 20), budget))

    flops = 2 * b_pad * (in_p * hid_p + hid_p * hid_p + hid_p * out_p)
    bytes_accessed = 4 * b_pad * (in_p + out_p) + weight_bytes
    cost = pl.CostEstimate(flops=flops,
                           transcendentals=2 * b_pad * out_p,  # exp + recip
                           bytes_accessed=bytes_accessed)

    out = pl.pallas_call(
        ffn_kernel,
        out_shape=jax.ShapeDtypeStruct((b_pad, out_p), dtype),
        grid=grid,
        in_specs=[
            pl.BlockSpec((tb, in_p), lambda i: (i, 0)),
            resident(w0.shape), resident(b0.shape),
            resident(w1.shape), resident(b1.shape),
            resident(w2.shape), resident(b2.shape),
        ],
        out_specs=pl.BlockSpec((tb, out_p), lambda i: (i, 0)),
        compiler_params=pltpu.CompilerParams(
            dimension_semantics=("parallel",),  # megacore sharding on v7x
            vmem_limit_bytes=vmem_limit,
        ),
        cost_estimate=cost,
    )(x, w0, b0, w1, b1, w2, b2)

    return out[:B, :out_d]


def ffn_forward(x, padded_params, orig_dims, block_b=1024):
    """Public wrapper: probes Buffered(1) support outside the jitted hot path."""
    return _ffn_forward(x, padded_params, orig_dims=tuple(orig_dims),
                        block_b=block_b,
                        single_buffer=_single_buffer_supported())


if __name__ == "__main__":
    # Matches FFN(params) with params = {'network_depth': 3, 'network_width': 32,
    #   'network_input_size': 16, 'network_output_size': 8}.
    batch, input_dim, hidden_dim, output_dim = 8, 16, 32, 8

    key = jax.random.PRNGKey(0)
    kx, kp = jax.random.split(key)
    x = jax.random.normal(kx, (batch, input_dim), jnp.float32)
    params = init_params(kp, input_dim, hidden_dim, output_dim)
    padded_params, orig_dims = pad_params(params)

    # Hoisted out of the hot path: keep activations lane-padded upstream.
    x_padded = pad_inputs(x, padded_params[0].shape[0])

    out = ffn_forward(x_padded, padded_params, orig_dims)
    jax.block_until_ready(out)

    # Reference in plain f32 JAX (unpadded params).  bf16 MXU weights + the
    # approx-reciprocal sigmoid epilogue -> relaxed tolerance.
    w0, b0, w1, b1, w2, b2 = params
    h = jnp.maximum(x @ w0 + b0, 0.0)
    h = jnp.maximum(h @ w1 + b1, 0.0)
    ref = jax.nn.sigmoid(h @ w2 + b2)
    assert out.shape == ref.shape, (out.shape, ref.shape)
    max_err = float(jnp.max(jnp.abs(out - ref)))
    assert max_err < 2e-2, f"mismatch vs reference (max |err| = {max_err})"

    print("KERNEL_OK")
</pallas_src>

<mosaic_0001>
module attributes {stable_mosaic.version = 11 : i64} {
  func.func @_probe_kernel(%arg0: i32, %arg1: memref<8x128xf32, #tpu.memory_space<vmem>>, %arg2: memref<8x128xf32, #tpu.memory_space<vmem>>, %arg3: memref<8x128xf32, #tpu.memory_space<vmem>>) attributes {dimension_semantics = [#tpu.dimension_semantics<arbitrary>], iteration_bounds = array<i64: 2>, scalar_prefetch = 0 : i64, scratch_operands = 0 : i64, tpu.core_type = #tpu.core_type<tc>, window_params = [{transform_indices = @transform_0, window_bounds = array<i64: 8, 128>}, {pipeline_mode = #tpu.pipeline_mode<synchronous>, transform_indices = @transform_1, window_bounds = array<i64: 8, 128>}, {transform_indices = @transform_2, window_bounds = array<i64: 8, 128>}]} {
    %c0 = arith.constant 0 : index
    %c0_0 = arith.constant 0 : index
    %0 = vector.load %arg1[%c0, %c0_0] : memref<8x128xf32, #tpu.memory_space<vmem>>, vector<8x128xf32>
    %c0_1 = arith.constant 0 : index
    %c0_2 = arith.constant 0 : index
    %1 = vector.load %arg2[%c0_1, %c0_2] : memref<8x128xf32, #tpu.memory_space<vmem>>, vector<8x128xf32>
    %2 = arith.addf %0, %1 : vector<8x128xf32>
    %c0_3 = arith.constant 0 : index
    %c0_4 = arith.constant 0 : index
    %3 = vector.load %arg3[%c0_3, %c0_4] : memref<8x128xf32, #tpu.memory_space<vmem>>, vector<8x128xf32>
    tpu.vector_store %arg3[%c0_3, %c0_4], %2 {strides = array<i32>} : memref<8x128xf32, #tpu.memory_space<vmem>>, vector<8x128xf32>,
    return
  }
  func.func @transform_0(%arg0: i32) -> (i32, i32) {
    %c0_i32 = arith.constant 0 : i32
    %c0_i32_0 = arith.constant 0 : i32
    return %arg0, %c0_i32 : i32, i32
  }
  func.func @transform_1(%arg0: i32) -> (i32, i32) {
    %c0_i32 = arith.constant 0 : i32
    %c0_i32_0 = arith.constant 0 : i32
    %c0_i32_1 = arith.constant 0 : i32
    return %c0_i32, %c0_i32_0 : i32, i32
  }
  func.func @transform_2(%arg0: i32) -> (i32, i32) {
    %c0_i32 = arith.constant 0 : i32
    %c0_i32_0 = arith.constant 0 : i32
    return %arg0, %c0_i32 : i32, i32
  }
}

module attributes {stable_mosaic.version = 11 : i64} {
  func.func @ffn_kernel(%arg0: i32, %arg1: memref<8x128xf32, #tpu.memory_space<vmem>>, %arg2: memref<128x128xbf16, #tpu.memory_space<vmem>>, %arg3: memref<1x128xf32, #tpu.memory_space<vmem>>, %arg4: memref<128x128xbf16, #tpu.memory_space<vmem>>, %arg5: memref<1x128xf32, #tpu.memory_space<vmem>>, %arg6: memref<128x128xbf16, #tpu.memory_space<vmem>>, %arg7: memref<1x128xf32, #tpu.memory_space<vmem>>, %arg8: memref<8x128xf32, #tpu.memory_space<vmem>>) attributes {dimension_semantics = [#tpu.dimension_semantics<parallel>], iteration_bounds = array<i64: 1>, scalar_prefetch = 0 : i64, scratch_operands = 0 : i64, tpu.core_type = #tpu.core_type<tc>, window_params = [{transform_indices = @transform_0, window_bounds = array<i64: 8, 128>}, {pipeline_mode = #tpu.pipeline_mode<synchronous>, transform_indices = @transform_1, window_bounds = array<i64: 128, 128>}, {pipeline_mode = #tpu.pipeline_mode<synchronous>, transform_indices = @transform_2, window_bounds = array<i64: 1, 128>}, {pipeline_mode = #tpu.pipeline_mode<synchronous>, transform_indices = @transform_3, window_bounds = array<i64: 128, 128>}, {pipeline_mode = #tpu.pipeline_mode<synchronous>, transform_indices = @transform_4, window_bounds = array<i64: 1, 128>}, {pipeline_mode = #tpu.pipeline_mode<synchronous>, transform_indices = @transform_5, window_bounds = array<i64: 128, 128>}, {pipeline_mode = #tpu.pipeline_mode<synchronous>, transform_indices = @transform_6, window_bounds = array<i64: 1, 128>}, {transform_indices = @transform_7, window_bounds = array<i64: 8, 128>}]} {
    %c0 = arith.constant 0 : index
    %c0_0 = arith.constant 0 : index
    %0 = vector.load %arg1[%c0, %c0_0] : memref<8x128xf32, #tpu.memory_space<vmem>>, vector<8x128xf32>
    %1 = arith.truncf %0 : vector<8x128xf32> to vector<8x128xbf16>
    %c0_1 = arith.constant 0 : index
    %c0_2 = arith.constant 0 : index
    %2 = vector.load %arg2[%c0_1, %c0_2] : memref<128x128xbf16, #tpu.memory_space<vmem>>, vector<128x128xbf16>
    %cst = arith.constant dense<0.000000e+00> : vector<8x128xf32>
    %3 = tpu.matmul %1, %2, %cst {dimension_numbers = #tpu.dot_dimension_numbers<[1], [0], [0], [1], [0, 0, 1, 1], [], []>} : vector<8x128xbf16>, vector<128x128xbf16>, vector<8x128xf32> -> vector<8x128xf32>
    %c0_3 = arith.constant 0 : index
    %c0_4 = arith.constant 0 : index
    %4 = vector.load %arg3[%c0_3, %c0_4] : memref<1x128xf32, #tpu.memory_space<vmem>>, vector<1x128xf32>
    %5 = vector.broadcast %4 : vector<1x128xf32> to vector<8x128xf32>
    %6 = arith.addf %3, %5 : vector<8x128xf32>
    %cst_5 = arith.constant 0.000000e+00 : f32
    %7 = vector.broadcast %cst_5 : f32 to vector<8x128xf32>
    %8 = arith.maximumf %6, %7 : vector<8x128xf32>
    %9 = arith.truncf %8 : vector<8x128xf32> to vector<8x128xbf16>
    %c0_6 = arith.constant 0 : index
    %c0_7 = arith.constant 0 : index
    %10 = vector.load %arg4[%c0_6, %c0_7] : memref<128x128xbf16, #tpu.memory_space<vmem>>, vector<128x128xbf16>
    %cst_8 = arith.constant dense<0.000000e+00> : vector<8x128xf32>
    %11 = tpu.matmul %9, %10, %cst_8 {dimension_numbers = #tpu.dot_dimension_numbers<[1], [0], [0], [1], [0, 0, 1, 1], [], []>} : vector<8x128xbf16>, vector<128x128xbf16>, vector<8x128xf32> -> vector<8x128xf32>
    %c0_9 = arith.constant 0 : index
    %c0_10 = arith.constant 0 : index
    %12 = vector.load %arg5[%c0_9, %c0_10] : memref<1x128xf32, #tpu.memory_space<vmem>>, vector<1x128xf32>
    %13 = vector.broadcast %12 : vector<1x128xf32> to vector<8x128xf32>
    %14 = arith.addf %11, %13 : vector<8x128xf32>
    %cst_11 = arith.constant 0.000000e+00 : f32
    %15 = vector.broadcast %cst_11 : f32 to vector<8x128xf32>
    %16 = arith.maximumf %14, %15 : vector<8x128xf32>
    %17 = arith.truncf %16 : vector<8x128xf32> to vector<8x128xbf16>
    %c0_12 = arith.constant 0 : index
    %c0_13 = arith.constant 0 : index
    %18 = vector.load %arg6[%c0_12, %c0_13] : memref<128x128xbf16, #tpu.memory_space<vmem>>, vector<128x128xbf16>
    %cst_14 = arith.constant dense<0.000000e+00> : vector<8x128xf32>
    %19 = tpu.matmul %17, %18, %cst_14 {dimension_numbers = #tpu.dot_dimension_numbers<[1], [0], [0], [1], [0, 0, 1, 1], [], []>} : vector<8x128xbf16>, vector<128x128xbf16>, vector<8x128xf32> -> vector<8x128xf32>
    %c0_15 = arith.constant 0 : index
    %c0_16 = arith.constant 0 : index
    %20 = vector.load %arg7[%c0_15, %c0_16] : memref<1x128xf32, #tpu.memory_space<vmem>>, vector<1x128xf32>
    %21 = vector.broadcast %20 : vector<1x128xf32> to vector<8x128xf32>
    %22 = arith.addf %19, %21 : vector<8x128xf32>
    %cst_17 = arith.constant 0.000000e+00 : f32
    %23 = vector.broadcast %cst_17 : f32 to vector<8x128xf32>
    %24 = arith.subf %23, %22 : vector<8x128xf32>
    %25 = math.exp %24 : vector<8x128xf32>
    %cst_18 = arith.constant 1.000000e+00 : f32
    %26 = vector.broadcast %cst_18 : f32 to vector<8x128xf32>
    %27 = arith.addf %26, %25 : vector<8x128xf32>
    %28 = tpu.reciprocal %27 {approx = true} : vector<8x128xf32> -> vector<8x128xf32>
    %c0_19 = arith.constant 0 : index
    %c0_20 = arith.constant 0 : index
    %29 = vector.load %arg8[%c0_19, %c0_20] : memref<8x128xf32, #tpu.memory_space<vmem>>, vector<8x128xf32>
    tpu.vector_store %arg8[%c0_19, %c0_20], %28 {strides = array<i32>} : memref<8x128xf32, #tpu.memory_space<vmem>>, vector<8x128xf32>,
    return
  }
  func.func @transform_0(%arg0: i32) -> (i32, i32) {
    %c0_i32 = arith.constant 0 : i32
    %c0_i32_0 = arith.constant 0 : i32
    return %arg0, %c0_i32 : i32, i32
  }
  func.func @transform_1(%arg0: i32) -> (i32, i32) {
    %c0_i32 = arith.constant 0 : i32
    %c0_i32_0 = arith.constant 0 : i32
    %c0_i32_1 = arith.constant 0 : i32
    return %c0_i32, %c0_i32_0 : i32, i32
  }
  func.func @transform_2(%arg0: i32) -> (i32, i32) {
    %c0_i32 = arith.constant 0 : i32
    %c0_i32_0 = arith.constant 0 : i32
    %c0_i32_1 = arith.constant 0 : i32
    return %c0_i32, %c0_i32_0 : i32, i32
  }
  func.func @transform_3(%arg0: i32) -> (i32, i32) {
    %c0_i32 = arith.constant 0 : i32
    %c0_i32_0 = arith.constant 0 : i32
    %c0_i32_1 = arith.constant 0 : i32
    return %c0_i32, %c0_i32_0 : i32, i32
  }
  func.func @transform_4(%arg0: i32) -> (i32, i32) {
    %c0_i32 = arith.constant 0 : i32
    %c0_i32_0 = arith.constant 0 : i32
    %c0_i32_1 = arith.constant 0 : i32
    return %c0_i32, %c0_i32_0 : i32, i32
  }
  func.func @transform_5(%arg0: i32) -> (i32, i32) {
    %c0_i32 = arith.constant 0 : i32
    %c0_i32_0 = arith.constant 0 : i32
    %c0_i32_1 = arith.constant 0 : i32
    return %c0_i32, %c0_i32_0 : i32, i32
  }
  func.func @transform_6(%arg0: i32) -> (i32, i32) {
    %c0_i32 = arith.constant 0 : i32
    %c0_i32_0 = arith.constant 0 : i32
    %c0_i32_1 = arith.constant 0 : i32
    return %c0_i32, %c0_i32_0 : i32, i32
  }
  func.func @transform_7(%arg0: i32) -> (i32, i32) {
    %c0_i32 = arith.constant 0 : i32
    %c0_i32_0 = arith.constant 0 : i32
    return %arg0, %c0_i32 : i32, i32
  }
}

</mosaic_0001>

<llo_original>
// kernel: tpu_custom_call.1
$region0: #{tpu_custom_call.1}
  #allocation0 [shape = 'u32[]', space=smem, size = 0x4, offset = 0x4, fixed_abs, tag = 'smem constant byte address 0x4 - core index']
  #allocation1 [shape = 'u32[144,128]{1,0:T(1,128)}', space=vmem, size = 0x12000, scoped, tag = 'internal scratch']
  %s0 = inlined_call_operand.hbm [shape: f32[16,128], index: 0, kind: input, shape index: {}]
  %s1 = inlined_call_operand.hbm [shape: f32[8,128], index: 1, kind: input, shape index: {}]
  %s2 = inlined_call_operand.hbm [shape: f32[16,128], index: 2, kind: output, shape index: {}]
  %s3 = sld [smem:[#allocation0]]
  $region49: #{tpu_custom_call.1} parent=0
    _
  %s5 = ssub.s32 1, %s3
  %s6 = scalar_select 0, %s5, %s3
  $region1: #{tpu_custom_call.1} parent=0
    #allocation2 [shape = 'u8[8192]{0}', space=vmem, size = 0x2000, scoped, tag = 'input window, operand 0']
    #allocation3 [shape = 's32[2]{0}', space=sflag, size = 0x8, scoped, tag = 'scoped memory for tpu_custom_call.1']
    #allocation4 [shape = 's32[2]{0}', space=sflag, size = 0x8, scoped, tag = 'scoped memory for tpu_custom_call.1']
    #allocation5 [shape = 'u8[4096]{0}', space=vmem, size = 0x1000, scoped, tag = 'input window, operand 1, single buffered']
    #allocation6 [shape = 's32[1]{0}', space=sflag, size = 0x4, scoped, tag = 'scoped memory for tpu_custom_call.1']
    #allocation7 [shape = 'u8[8192]{0}', space=vmem, size = 0x2000, scoped, tag = 'output window, operand 0']
    %7 = vsyncpa [#allocation3], 0
    %s8 = scalar_lea.sflag [#allocation3], 1
    %9 = vsyncpa %s8, 0
    %10 = vsyncpa [#allocation6], 0
    %11 = vsyncpa [#allocation4], 0
    %s12 = scalar_lea.sflag [#allocation4], 1
    %13 = vsyncpa %s12, 0
    loop: start=0, step=1, limit=4
    $region2: #{tpu_custom_call.1} parent=1 // loop_pre_header
      _
    $region3: #{tpu_custom_call.1} parent=1 // loop_header
      %s15 = sphi 0, %s19
      %p16 = scmp.ge.s32.totalorder %s15, 4
      %s25 = sphi 0, %s27
      %s28 = sphi 0, %s25
      %s29 = sphi 0, %s28
      %s45 = sphi 0, %s29
      %s49 = sphi 0, %s49
      %s51 = sphi 0, %s49
      %s52 = sphi 0, %s51
      %s66 = sphi 0, %s52
      %s72 = sphi 0, %s74
      %s75 = sphi 0, %s72
      %s76 = sphi 0, %s75
      %s92 = sphi 0, %s76
    $region4: #{tpu_custom_call.1} parent=1 // loop_header_branch
      %18 = sbr.rel (%p16) target = $region8
    $region5: #{tpu_custom_call.1} parent=1 // loop_body
      %s20 = ssub.s32 %s15, 1
      %s21 = ssub.s32 %s15, 2
      %s22 = sadd.s32 %s15, 1
      %s23 = ssub.s32 %s15, %s22
      %p24 = scmp.eq.s32.totalorder %s23, 0
      %s26 = sadd.s32 %s25, 1
      %s27 = scalar_select %p24, %s25, %s26
      %p30 = pneg %p24
      %p31 = scmp.eq.s32.totalorder %s15, 1
      %p32 = por %p30, %p31
      %p33 = scmp.ne.s32.totalorder %s25, %s28
      %p34 = scmp.eq.s32.totalorder %s15, 0
      %p35 = por %p33, %p34
      %p36 = scmp.ne.s32.totalorder %s25, %s28
      %p37 = scmp.eq.s32.totalorder %s20, 1
      %p38 = por %p36, %p37
      %p39 = scmp.ne.s32.totalorder %s28, %s29
      %p40 = scmp.eq.s32.totalorder %s20, 0
      %p41 = por %p39, %p40
      %p42 = scmp.ne.s32.totalorder %s28, %s29
      %p43 = scmp.eq.s32.totalorder %s21, 1
      %p44 = por %p42, %p43
      %p46 = scmp.ne.s32.totalorder %s29, %s45
      %p47 = scmp.eq.s32.totalorder %s21, 0
      %p48 = por %p46, %p47
      %s50 = sadd.s32 %s49, 1
      %p53 = scmp.eq.s32.totalorder %s15, 1
      %p54 = scmp.ne.s32.totalorder %s49, %s51
      %p55 = scmp.eq.s32.totalorder %s15, 0
      %p56 = por %p54, %p55
      %p57 = scmp.ne.s32.totalorder %s49, %s51
      %p58 = scmp.eq.s32.totalorder %s20, 1
      %p59 = por %p57, %p58
      %p60 = scmp.ne.s32.totalorder %s51, %s52
      %p61 = scmp.eq.s32.totalorder %s20, 0
      %p62 = por %p60, %p61
      %p63 = scmp.ne.s32.totalorder %s51, %s52
      %p64 = scmp.eq.s32.totalorder %s21, 1
      %p65 = por %p63, %p64
      %p67 = scmp.ne.s32.totalorder %s52, %s66
      %p68 = scmp.eq.s32.totalorder %s21, 0
      %p69 = por %p67, %p68
      %s70 = ssub.s32 %s15, %s22
      %p71 = scmp.eq.s32.totalorder %s70, 0
      %s73 = sadd.s32 %s72, 1
      %s74 = scalar_select %p71, %s72, %s73
      %p77 = pneg %p71
      %p78 = scmp.eq.s32.totalorder %s15, 1
      %p79 = por %p77, %p78
      %p80 = scmp.ne.s32.totalorder %s72, %s75
      %p81 = scmp.eq.s32.totalorder %s15, 0
      %p82 = por %p80, %p81
      %p83 = scmp.ne.s32.totalorder %s72, %s75
      %p84 = scmp.eq.s32.totalorder %s20, 1
      %p85 = por %p83, %p84
      %p86 = scmp.ne.s32.totalorder %s75, %s76
      %p87 = scmp.eq.s32.totalorder %s20, 0
      %p88 = por %p86, %p87
      %p89 = scmp.ne.s32.totalorder %s75, %s76
      %p90 = scmp.eq.s32.totalorder %s21, 1
      %p91 = por %p89, %p90
      %p93 = scmp.ne.s32.totalorder %s76, %s92
      %p94 = scmp.eq.s32.totalorder %s21, 0
      %p95 = por %p93, %p94
      %p96 = scmp.le.s32.totalorder 1, %s15
      %p97 = scmp.lt.s32.totalorder %s15, 3
      %p98 = pnand %p96, %p97
      %p99 = pneg %p98
      // Predicated region
      $region9: #{tpu_custom_call.1} parent=5 // pred_check
        _
      $region10: #{tpu_custom_call.1} parent=5 // pred_check_branch
        %101 = sbr.rel (%p98) target = $region12
      $region11: #{tpu_custom_call.1} parent=5 // pred_region
        %s102 = ssub.s32 %s15, 1
        // Predicated region
        $region13: #{tpu_custom_call.1} parent=11 // pred_check
          %p103 = pneg %p62
        $region14: #{tpu_custom_call.1} parent=11 // pred_check_branch
          %105 = sbr.rel (%p103) target = $region16
        $region15: #{tpu_custom_call.1} parent=11 // pred_region
          %s107 = ssub.s32 128, 128
          %108 = vsyncadd [#allocation6], %s107
          %s110 = sshll.u32 [#allocation5], 4
          %s111 = int_to_ptr.vmem [resolvable:$true] %s110
          %113 = dma.hbm_to_vmem [thread:$0]  %s1, 128, %s111, [#allocation6]
        $region16: #{tpu_custom_call.1} parent=11 // pred_fallthru
          _
      $region12: #{tpu_custom_call.1} parent=5 // pred_fallthru
        _
      %p114 = scmp.lt.s32.totalorder %s15, 2
      // Predicated region
      $region17: #{tpu_custom_call.1} parent=5 // pred_check
        %p115 = pneg %p114
      $region18: #{tpu_custom_call.1} parent=5 // pred_check_branch
        %117 = sbr.rel (%p115) target = $region20
      $region19: #{tpu_custom_call.1} parent=5 // pred_region
        // Predicated region
        $region21: #{tpu_custom_call.1} parent=19 // pred_check
          %p118 = pneg %p35
        $region22: #{tpu_custom_call.1} parent=19 // pred_check_branch
          %120 = sbr.rel (%p118) target = $region24
        $region23: #{tpu_custom_call.1} parent=19 // pred_region
          %s121 = sand.u32 %s25, 1
          %s122 = scalar_lea.sflag [#allocation3], %s121
          %s123 = sand.u32 %s25, 1
          %s124 = smul.addr %s123, 8
          %s125 = scalar_lea.vmem [#allocation2], %s124
          %s127 = ssub.s32 128, 128
          %128 = vsyncadd %s122, %s127
          %s129 = smul.addr %s15, 128
          %s130 = scalar_lea.hbm %s0, %s129
          %s132 = sshll.u32 %s125, 4
          %s133 = int_to_ptr.vmem [resolvable:$true] %s132
          %135 = dma.hbm_to_vmem [thread:$0]  %s130, 128, %s133, %s122
        $region24: #{tpu_custom_call.1} parent=19 // pred_fallthru
          _
      $region20: #{tpu_custom_call.1} parent=5 // pred_fallthru
        _
      %p136 = scmp.le.s32.totalorder 1, %s15
      %p137 = scmp.lt.s32.totalorder %s15, 3
      %p138 = pnand %p136, %p137
      %p139 = pneg %p138
      // Predicated region
      $region25: #{tpu_custom_call.1} parent=5 // pred_check
        _
      $region26: #{tpu_custom_call.1} parent=5 // pred_check_branch
        %141 = sbr.rel (%p138) target = $region28
      $region27: #{tpu_custom_call.1} parent=5 // pred_region
        %s142 = ssub.s32 %s15, 1
        %s143 = sand.u32 %s28, 1
        %s144 = scalar_lea.sflag [#allocation3], %s143
        %s145 = sand.u32 %s28, 1
        %s146 = smul.addr %s145, 8
        %s147 = scalar_lea.vmem [#allocation2], %s146
        // Predicated region
        $region29: #{tpu_custom_call.1} parent=27 // pred_check
          %p148 = pneg %p41
        $region30: #{tpu_custom_call.1} parent=27 // pred_check_branch
          %150 = sbr.rel (%p148) target = $region32
        $region31: #{tpu_custom_call.1} parent=27 // pred_region
          %151 = dma.done %s144, 128
        $region32: #{tpu_custom_call.1} parent=27 // pred_fallthru
          _
        // Predicated region
        $region33: #{tpu_custom_call.1} parent=27 // pred_check
          %p152 = pneg %p62
        $region34: #{tpu_custom_call.1} parent=27 // pred_check_branch
          %154 = sbr.rel (%p152) target = $region36
        $region35: #{tpu_custom_call.1} parent=27 // pred_region
          %155 = dma.done [#allocation6], 128
        $region36: #{tpu_custom_call.1} parent=27 // pred_fallthru
          _
        %s156 = sand.u32 %s28, 1
        %s157 = scalar_lea.sflag [#allocation3], %s156
        %s158 = sand.u32 %s28, 1
        %s159 = smul.addr %s158, 8
        %s160 = scalar_lea.vmem [#allocation2], %s159
        %p161 = pneg %p41
        %p162 = pneg %p38
        %p163 = pneg %p62
        %p164 = pneg %p59
        %p165 = pneg %p88
        %p166 = pneg %p85
        %s167 = sand.u32 %s75, 1
        %s168 = scalar_lea.sflag [#allocation4], %s167
        %s169 = sand.u32 %s75, 1
        %s170 = smul.addr %s169, 8
        %s171 = scalar_lea.vmem [#allocation7], %s170
        %v172 = vld [vmem:[%s147] sm:$0xff]
        %v173 = vld [vmem:[#allocation5] sm:$0xff]
        %v174 = vadd.f32 %v172, %v173
        %175 = vst [vmem:[%s171] sm:$0xff] %v174
        %s176 = sand.u32 %s75, 1
        %s177 = scalar_lea.sflag [#allocation4], %s176
        %s178 = sand.u32 %s75, 1
        %s179 = smul.addr %s178, 8
        %s180 = scalar_lea.vmem [#allocation7], %s179
        // Predicated region
        $region37: #{tpu_custom_call.1} parent=27 // pred_check
          %p181 = pneg %p85
        $region38: #{tpu_custom_call.1} parent=27 // pred_check_branch
          %183 = sbr.rel (%p181) target = $region40
        $region39: #{tpu_custom_call.1} parent=27 // pred_region
          %s185 = ssub.s32 128, 128
          %186 = vsyncadd %s177, %s185
          %s187 = smul.addr %s20, 128
          %s188 = scalar_lea.hbm %s2, %s187
          %s190 = sshll.u32 %s180, 4
          %s191 = int_to_ptr.vmem [resolvable:$true] %s190
          %193 = dma.vmem_to_hbm [thread:$0]  %s191, 128, %s188, %s177
        $region40: #{tpu_custom_call.1} parent=27 // pred_fallthru
          _
      $region28: #{tpu_custom_call.1} parent=5 // pred_fallthru
        _
      %p194 = scmp.le.s32.totalorder 2, %s15
      // Predicated region
      $region41: #{tpu_custom_call.1} parent=5 // pred_check
        %p195 = pneg %p194
      $region42: #{tpu_custom_call.1} parent=5 // pred_check_branch
        %197 = sbr.rel (%p195) target = $region44
      $region43: #{tpu_custom_call.1} parent=5 // pred_region
        %s198 = ssub.s32 %s15, 2
        // Predicated region
        $region45: #{tpu_custom_call.1} parent=43 // pred_check
          %p199 = pneg %p91
        $region46: #{tpu_custom_call.1} parent=43 // pred_check_branch
          %201 = sbr.rel (%p199) target = $region48
        $region47: #{tpu_custom_call.1} parent=43 // pred_region
          %s202 = sand.u32 %s76, 1
          %s203 = scalar_lea.sflag [#allocation4], %s202
          %s204 = sand.u32 %s76, 1
          %s205 = smul.addr %s204, 8
          %s206 = scalar_lea.vmem [#allocation7], %s205
          %207 = dma.done %s203, 128
        $region48: #{tpu_custom_call.1} parent=43 // pred_fallthru
          _
      $region44: #{tpu_custom_call.1} parent=5 // pred_fallthru
        _
    $region6: #{tpu_custom_call.1} parent=1 // loop_footer
      %s19 = sadd.s32 1, %s15
    $region7: #{tpu_custom_call.1} parent=1 // loop_footer_branch
      %14 = sbr.rel target = $region3
    $region8: #{tpu_custom_call.1} parent=1 // loop_exit
      _
    %208 = vsyncpa [#allocation3], 1
    %s209 = scalar_lea.sflag [#allocation3], 1
    %210 = vsyncpa %s209, 1
    %211 = vsyncpa [#allocation6], 1
    %212 = vsyncpa [#allocation4], 1
    %s213 = scalar_lea.sflag [#allocation4], 1
    %214 = vsyncpa %s213, 1

// kernel: _ffn_forward.1
$region0: #{_ffn_forward.1}
  #allocation0 [shape = 'u32[]', space=smem, size = 0x4, offset = 0x4, fixed_abs, tag = 'smem constant byte address 0x4 - core index']
  #allocation1 [shape = 'u32[144,128]{1,0:T(1,128)}', space=vmem, size = 0x12000, scoped, tag = 'internal scratch']
  %s0 = inlined_call_operand.hbm [shape: f32[8,128], index: 0, kind: input, shape index: {}]
  %s1 = inlined_call_operand.hbm [shape: bf16[128,128], index: 1, kind: input, shape index: {}]
  %s2 = inlined_call_operand.vmem [shape: f32[1,128], index: 2, kind: input, shape index: {}]
  %s3 = inlined_call_operand.hbm [shape: bf16[128,128], index: 3, kind: input, shape index: {}]
  %s4 = inlined_call_operand.vmem [shape: f32[1,128], index: 4, kind: input, shape index: {}]
  %s5 = inlined_call_operand.hbm [shape: bf16[128,128], index: 5, kind: input, shape index: {}]
  %s6 = inlined_call_operand.vmem [shape: f32[1,128], index: 6, kind: input, shape index: {}]
  %s7 = inlined_call_operand.hbm [shape: f32[8,128], index: 7, kind: output, shape index: {}]
  %s8 = sld [smem:[#allocation0]]
  $region54: #{_ffn_forward.1} parent=0
    _
  %s10 = ssub.s32 1, %s8
  %s11 = scalar_select 0, %s10, %s8
  $region1: #{_ffn_forward.1} parent=0
    #allocation2 [shape = 'u8[4096]{0}', space=vmem, size = 0x1000, scoped, tag = 'input window, operand 0, single buffered']
    #allocation3 [shape = 's32[1]{0}', space=sflag, size = 0x4, scoped, tag = 'scoped memory for _ffn_forward.1']
    #allocation4 [shape = 's32[1]{0}', space=sflag, size = 0x4, scoped, tag = 'scoped memory for _ffn_forward.1']
    #allocation5 [shape = 'u8[32768]{0}', space=vmem, size = 0x8000, scoped, tag = 'input window, operand 1, single buffered']
    #allocation6 [shape = 's32[1]{0}', space=sflag, size = 0x4, scoped, tag = 'scoped memory for _ffn_forward.1']
    #allocation7 [shape = 'u8[32768]{0}', space=vmem, size = 0x8000, scoped, tag = 'input window, operand 3, single buffered']
    #allocation8 [shape = 'u8[32768]{0}', space=vmem, size = 0x8000, scoped, tag = 'input window, operand 5, single buffered']
    #allocation9 [shape = 's32[1]{0}', space=sflag, size = 0x4, scoped, tag = 'scoped memory for _ffn_forward.1']
    #allocation10 [shape = 'u8[4096]{0}', space=vmem, size = 0x1000, scoped, tag = 'output window, operand 0, single buffered']
    %12 = vsyncpa [#allocation3], 0
    %13 = vsyncpa [#allocation6], 0
    %14 = vsyncpa [#allocation9], 0
    %15 = vsyncpa [#allocation4], 0
    // Predicated region
    $region2: #{_ffn_forward.1} parent=1 // pred_check
      _
    $region3: #{_ffn_forward.1} parent=1 // pred_check_branch
      %17 = sbr.rel (0) target = $region5
    $region4: #{_ffn_forward.1} parent=1 // pred_region
      %s19 = ssub.s32 128, 128
      %20 = vsyncadd [#allocation3], %s19
      %s22 = sshll.u32 [#allocation2], 4
      %s23 = int_to_ptr.vmem [resolvable:$true] %s22
      %25 = dma.hbm_to_vmem [thread:$0]  %s0, 128, %s23, [#allocation3]
    $region5: #{_ffn_forward.1} parent=1 // pred_fallthru
      _
    // Predicated region
    $region6: #{_ffn_forward.1} parent=1 // pred_check
      _
    $region7: #{_ffn_forward.1} parent=1 // pred_check_branch
      %27 = sbr.rel (0) target = $region9
    $region8: #{_ffn_forward.1} parent=1 // pred_region
      %s29 = ssub.s32 1024, 1024
      %30 = vsyncadd [#allocation6], %s29
      %s31 = sshll.u32 [#allocation5], 4
      %s32 = int_to_ptr.vmem [resolvable:$true] %s31
      %37 = dma.hbm_to_vmem [thread:$0]  %s1, 1024, %s32, [#allocation6], 64, 64, 4
    $region9: #{_ffn_forward.1} parent=1 // pred_fallthru
      _
    // Predicated region
    $region10: #{_ffn_forward.1} parent=1 // pred_check
      _
    $region11: #{_ffn_forward.1} parent=1 // pred_check_branch
      %39 = sbr.rel (0) target = $region13
    $region12: #{_ffn_forward.1} parent=1 // pred_region
      _
    $region13: #{_ffn_forward.1} parent=1 // pred_fallthru
      _
    // Predicated region
    $region14: #{_ffn_forward.1} parent=1 // pred_check
      _
    $region15: #{_ffn_forward.1} parent=1 // pred_check_branch
      %41 = sbr.rel (0) target = $region17
    $region16: #{_ffn_forward.1} parent=1 // pred_region
      %s43 = ssub.s32 1024, 1024
      %44 = vsyncadd [#allocation6], %s43
      %s45 = sshll.u32 [#allocation7], 4
      %s46 = int_to_ptr.vmem [resolvable:$true] %s45
      %51 = dma.hbm_to_vmem [thread:$0]  %s3, 1024, %s46, [#allocation6], 64, 64, 4
    $region17: #{_ffn_forward.1} parent=1 // pred_fallthru
      _
    // Predicated region
    $region18: #{_ffn_forward.1} parent=1 // pred_check
      _
    $region19: #{_ffn_forward.1} parent=1 // pred_check_branch
      %53 = sbr.rel (0) target = $region21
    $region20: #{_ffn_forward.1} parent=1 // pred_region
      _
    $region21: #{_ffn_forward.1} parent=1 // pred_fallthru
      _
    // Predicated region
    $region22: #{_ffn_forward.1} parent=1 // pred_check
      _
    $region23: #{_ffn_forward.1} parent=1 // pred_check_branch
      %55 = sbr.rel (0) target = $region25
    $region24: #{_ffn_forward.1} parent=1 // pred_region
      %s57 = ssub.s32 1024, 1024
      %58 = vsyncadd [#allocation9], %s57
      %s59 = sshll.u32 [#allocation8], 4
      %s60 = int_to_ptr.vmem [resolvable:$true] %s59
      %65 = dma.hbm_to_vmem [thread:$0]  %s5, 1024, %s60, [#allocation9], 64, 64, 4
    $region25: #{_ffn_forward.1} parent=1 // pred_fallthru
      _
    // Predicated region
    $region26: #{_ffn_forward.1} parent=1 // pred_check
      _
    $region27: #{_ffn_forward.1} parent=1 // pred_check_branch
      %67 = sbr.rel (0) target = $region29
    $region28: #{_ffn_forward.1} parent=1 // pred_region
      _
    $region29: #{_ffn_forward.1} parent=1 // pred_fallthru
      _
    // Predicated region
    $region30: #{_ffn_forward.1} parent=1 // pred_check
      _
    $region31: #{_ffn_forward.1} parent=1 // pred_check_branch
      %69 = sbr.rel (0) target = $region33
    $region32: #{_ffn_forward.1} parent=1 // pred_region
      %70 = dma.done [#allocation3], 128
    $region33: #{_ffn_forward.1} parent=1 // pred_fallthru
      _
    // Predicated region
    $region34: #{_ffn_forward.1} parent=1 // pred_check
      _
    $region35: #{_ffn_forward.1} parent=1 // pred_check_branch
      %72 = sbr.rel (0) target = $region37
    $region36: #{_ffn_forward.1} parent=1 // pred_region
      %73 = dma.done [#allocation6], 1024
    $region37: #{_ffn_forward.1} parent=1 // pred_fallthru
      _
    // Predicated region
    $region38: #{_ffn_forward.1} parent=1 // pred_check
      _
    $region39: #{_ffn_forward.1} parent=1 // pred_check_branch
      %75 = sbr.rel (0) target = $region41
    $region40: #{_ffn_forward.1} parent=1 // pred_region
      %76 = dma.done [#allocation6], 1024
    $region41: #{_ffn_forward.1} parent=1 // pred_fallthru
      _
    // Predicated region
    $region42: #{_ffn_forward.1} parent=1 // pred_check
      _
    $region43: #{_ffn_forward.1} parent=1 // pred_check_branch
      %78 = sbr.rel (0) target = $region45
    $region44: #{_ffn_forward.1} parent=1 // pred_region
      %79 = dma.done [#allocation9], 1024
    $region45: #{_ffn_forward.1} parent=1 // pred_fallthru
      _
    %v81 = vld [vmem:[#allocation2] sm:$0xff]
    %v82 = vpack.c.bf16 %v81, %v81
    %v83 = vld [vmem:[#allocation5] sm:$0xf]
    %v84 = vld [vmem:[#allocation5 + $0x4] sm:$0xf]
    %v85 = vld [vmem:[#allocation5 + $0x8] sm:$0xf]
    %v86 = vld [vmem:[#allocation5 + $0xc] sm:$0xf]
    %v87 = vld [vmem:[#allocation5 + $0x10] sm:$0xf]
    %v88 = vld [vmem:[#allocation5 + $0x14] sm:$0xf]
    %v89 = vld [vmem:[#allocation5 + $0x18] sm:$0xf]
    %v90 = vld [vmem:[#allocation5 + $0x1c] sm:$0xf]
    %v91 = vld [vmem:[#allocation5 + $0x20] sm:$0xf]
    %v92 = vld [vmem:[#allocation5 + $0x24] sm:$0xf]
    %v93 = vld [vmem:[#allocation5 + $0x28] sm:$0xf]
    %v94 = vld [vmem:[#allocation5 + $0x2c] sm:$0xf]
    %v95 = vld [vmem:[#allocation5 + $0x30] sm:$0xf]
    %v96 = vld [vmem:[#allocation5 + $0x34] sm:$0xf]
    %v97 = vld [vmem:[#allocation5 + $0x38] sm:$0xf]
    %v98 = vld [vmem:[#allocation5 + $0x3c] sm:$0xf]
    %v99 = vld [vmem:[%s2] sm:$0x1]
    %v101 = vlaneseq
    %v102 = vshrl.u32 %v101, 7
    %v103 = vsub.s32 0, %v102
    %v104 = vrot.slane %v99, %v103
    %v122 = vunpack.c.l.b16 %v83
    %v123 = vunpack.c.l.b16 %v84
    %v124 = vunpack.c.l.b16 %v85
    %v125 = vunpack.c.l.b16 %v86
    %v126 = vunpack.c.l.b16 %v87
    %v127 = vunpack.c.l.b16 %v88
    %v128 = vunpack.c.l.b16 %v89
    %v129 = vunpack.c.l.b16 %v90
    %v130 = vunpack.c.l.b16 %v91
    %v131 = vunpack.c.l.b16 %v92
    %v132 = vunpack.c.l.b16 %v93
    %v133 = vunpack.c.l.b16 %v94
    %v134 = vunpack.c.l.b16 %v95
    %v135 = vunpack.c.l.b16 %v96
    %v136 = vunpack.c.l.b16 %v97
    %v137 = vunpack.c.l.b16 %v98
    %v138 = vpack.c.b16 %v123, %v122
    %v139 = vpack.c.b16 %v125, %v124
    %v140 = vpack.c.b16 %v127, %v126
    %v141 = vpack.c.b16 %v129, %v128
    %v142 = vpack.c.b16 %v131, %v130
    %v143 = vpack.c.b16 %v133, %v132
    %v144 = vpack.c.b16 %v135, %v134
    %v145 = vpack.c.b16 %v137, %v136
    %154 = vmatprep.subr.bf16.mxu0 0
    %155 = vmatpush1.bf16.msra.mxu0 %v138
    %156 = vmatprep.subr.bf16.mxu0 0
    %157 = vmatpush1.bf16.msra.mxu0 %v139
    %158 = vmatprep.subr.bf16.mxu0 0
    %159 = vmatpush1.bf16.msra.mxu0 %v140
    %160 = vmatprep.subr.bf16.mxu0 0
    %161 = vmatpush1.bf16.msra.mxu0 %v141
    %162 = vmatprep.subr.bf16.mxu0 0
    %163 = vmatpush1.bf16.msra.mxu0 %v142
    %164 = vmatprep.subr.bf16.mxu0 0
    %165 = vmatpush1.bf16.msra.mxu0 %v143
    %166 = vmatprep.subr.bf16.mxu0 0
    %167 = vmatpush1.bf16.msra.mxu0 %v144
    %168 = vmatprep.subr.bf16.mxu0 0
    %169 = vmatpush1.bf16.msra.mxu0 %v145
    %170 = vmatprep.subr.bf16.mxu0 0
    %171 = vmatpush1.bf16.msra.mxu0 0
    %172 = vmatprep.subr.bf16.mxu0 0
    %173 = vmatpush1.bf16.msra.mxu0 0
    %174 = vmatprep.subr.bf16.mxu0 0
    %175 = vmatpush1.bf16.msra.mxu0 0
    %176 = vmatprep.subr.bf16.mxu0 0
    %177 = vmatpush1.bf16.msra.mxu0 0
    %178 = vmatprep.subr.bf16.mxu0 0
    %179 = vmatpush1.bf16.msra.mxu0 0
    %180 = vmatprep.subr.bf16.mxu0 0
    %181 = vmatpush1.bf16.msra.mxu0 0
    %182 = vmatprep.subr.bf16.mxu0 0
    %183 = vmatpush1.bf16.msra.mxu0 0
    %184 = vmatprep.subr.bf16.mxu0 0
    %185 = vmatpush1.bf16.msra.mxu0 0
    %186 = vmatprep.mubr.bf16.mxu0 0
    %187 = vmatmul.mubr.bf16.gmra.mrb[0].mxu0 %v82
    %v188 = vpop.f32.mrb[0].mxu0
    %v189 = vadd.f32 %v104, %v188
    %v190 = vpop.f32.mrb[0].mxu0
    %v191 = vpop.f32.mrb[0].mxu0
    %v192 = vpop.f32.mrb[0].mxu0
    %193 = vdwg.mxu0
    %v194 = vmax.f32 %v189, 0.0
    %v195 = vpack.c.bf16 %v194, %v194
    %v196 = vld [vmem:[#allocation7] sm:$0xf]
    %v197 = vld [vmem:[#allocation7 + $0x4] sm:$0xf]
    %v198 = vld [vmem:[#allocation7 + $0x8] sm:$0xf]
    %v199 = vld [vmem:[#allocation7 + $0xc] sm:$0xf]
    %v200 = vld [vmem:[#allocation7 + $0x10] sm:$0xf]
    %v201 = vld [vmem:[#allocation7 + $0x14] sm:$0xf]
    %v202 = vld [vmem:[#allocation7 + $0x18] sm:$0xf]
    %v203 = vld [vmem:[#allocation7 + $0x1c] sm:$0xf]
    %v204 = vld [vmem:[#allocation7 + $0x20] sm:$0xf]
    %v205 = vld [vmem:[#allocation7 + $0x24] sm:$0xf]
    %v206 = vld [vmem:[#allocation7 + $0x28] sm:$0xf]
    %v207 = vld [vmem:[#allocation7 + $0x2c] sm:$0xf]
    %v208 = vld [vmem:[#allocation7 + $0x30] sm:$0xf]
    %v209 = vld [vmem:[#allocation7 + $0x34] sm:$0xf]
    %v210 = vld [vmem:[#allocation7 + $0x38] sm:$0xf]
    %v211 = vld [vmem:[#allocation7 + $0x3c] sm:$0xf]
    %v212 = vld [vmem:[%s4] sm:$0x1]
    %v214 = vlaneseq
    %v215 = vshrl.u32 %v214, 7
    %v216 = vsub.s32 0, %v215
    %v217 = vrot.slane %v212, %v216
    %v235 = vunpack.c.l.b16 %v196
    %v236 = vunpack.c.l.b16 %v197
    %v237 = vunpack.c.l.b16 %v198
    %v238 = vunpack.c.l.b16 %v199
    %v239 = vunpack.c.l.b16 %v200
    %v240 = vunpack.c.l.b16 %v201
    %v241 = vunpack.c.l.b16 %v202
    %v242 = vunpack.c.l.b16 %v203
    %v243 = vunpack.c.l.b16 %v204
    %v244 = vunpack.c.l.b16 %v205
    %v245 = vunpack.c.l.b16 %v206
    %v246 = vunpack.c.l.b16 %v207
    %v247 = vunpack.c.l.b16 %v208
    %v248 = vunpack.c.l.b16 %v209
    %v249 = vunpack.c.l.b16 %v210
    %v250 = vunpack.c.l.b16 %v211
    %v251 = vpack.c.b16 %v236, %v235
    %v252 = vpack.c.b16 %v238, %v237
    %v253 = vpack.c.b16 %v240, %v239
    %v254 = vpack.c.b16 %v242, %v241
    %v255 = vpack.c.b16 %v244, %v243
    %v256 = vpack.c.b16 %v246, %v245
    %v257 = vpack.c.b16 %v248, %v247
    %v258 = vpack.c.b16 %v250, %v249
    %267 = vmatprep.subr.bf16.mxu0 0
    %268 = vmatpush1.bf16.msra.mxu0 %v251
    %269 = vmatprep.subr.bf16.mxu0 0
    %270 = vmatpush1.bf16.msra.mxu0 %v252
    %271 = vmatprep.subr.bf16.mxu0 0
    %272 = vmatpush1.bf16.msra.mxu0 %v253
    %273 = vmatprep.subr.bf16.mxu0 0
    %274 = vmatpush1.bf16.msra.mxu0 %v254
    %275 = vmatprep.subr.bf16.mxu0 0
    %276 = vmatpush1.bf16.msra.mxu0 %v255
    %277 = vmatprep.subr.bf16.mxu0 0
    %278 = vmatpush1.bf16.msra.mxu0 %v256
    %279 = vmatprep.subr.bf16.mxu0 0
    %280 = vmatpush1.bf16.msra.mxu0 %v257
    %281 = vmatprep.subr.bf16.mxu0 0
    %282 = vmatpush1.bf16.msra.mxu0 %v258
    %283 = vmatprep.subr.bf16.mxu0 0
    %284 = vmatpush1.bf16.msra.mxu0 0
    %285 = vmatprep.subr.bf16.mxu0 0
    %286 = vmatpush1.bf16.msra.mxu0 0
    %287 = vmatprep.subr.bf16.mxu0 0
    %288 = vmatpush1.bf16.msra.mxu0 0
    %289 = vmatprep.subr.bf16.mxu0 0
    %290 = vmatpush1.bf16.msra.mxu0 0
    %291 = vmatprep.subr.bf16.mxu0 0
    %292 = vmatpush1.bf16.msra.mxu0 0
    %293 = vmatprep.subr.bf16.mxu0 0
    %294 = vmatpush1.bf16.msra.mxu0 0
    %295 = vmatprep.subr.bf16.mxu0 0
    %296 = vmatpush1.bf16.msra.mxu0 0
    %297 = vmatprep.subr.bf16.mxu0 0
    %298 = vmatpush1.bf16.msra.mxu0 0
    %299 = vmatprep.mubr.bf16.mxu0 0
    %300 = vmatmul.mubr.bf16.gmra.mrb[0].mxu0 %v195
    %v301 = vpop.f32.mrb[0].mxu0
    %v302 = vadd.f32 %v217, %v301
    %v303 = vpop.f32.mrb[0].mxu0
    %v304 = vpop.f32.mrb[0].mxu0
    %v305 = vpop.f32.mrb[0].mxu0
    %306 = vdwg.mxu0
    %v307 = vmax.f32 %v302, 0.0
    %v308 = vpack.c.bf16 %v307, %v307
    %v309 = vld [vmem:[#allocation8] sm:$0xf]
    %v310 = vld [vmem:[#allocation8 + $0x4] sm:$0xf]
    %v311 = vld [vmem:[#allocation8 + $0x8] sm:$0xf]
    %v312 = vld [vmem:[#allocation8 + $0xc] sm:$0xf]
    %v313 = vld [vmem:[#allocation8 + $0x10] sm:$0xf]
    %v314 = vld [vmem:[#allocation8 + $0x14] sm:$0xf]
    %v315 = vld [vmem:[#allocation8 + $0x18] sm:$0xf]
    %v316 = vld [vmem:[#allocation8 + $0x1c] sm:$0xf]
    %v317 = vld [vmem:[#allocation8 + $0x20] sm:$0xf]
    %v318 = vld [vmem:[#allocation8 + $0x24] sm:$0xf]
    %v319 = vld [vmem:[#allocation8 + $0x28] sm:$0xf]
    %v320 = vld [vmem:[#allocation8 + $0x2c] sm:$0xf]
    %v321 = vld [vmem:[#allocation8 + $0x30] sm:$0xf]
    %v322 = vld [vmem:[#allocation8 + $0x34] sm:$0xf]
    %v323 = vld [vmem:[#allocation8 + $0x38] sm:$0xf]
    %v324 = vld [vmem:[#allocation8 + $0x3c] sm:$0xf]
    %v325 = vld [vmem:[%s6] sm:$0x1]
    %v327 = vlaneseq
    %v328 = vshrl.u32 %v327, 7
    %v329 = vsub.s32 0, %v328
    %v330 = vrot.slane %v325, %v329
    %v348 = vunpack.c.l.b16 %v309
    %v349 = vunpack.c.l.b16 %v310
    %v350 = vunpack.c.l.b16 %v311
    %v351 = vunpack.c.l.b16 %v312
    %v352 = vunpack.c.l.b16 %v313
    %v353 = vunpack.c.l.b16 %v314
    %v354 = vunpack.c.l.b16 %v315
    %v355 = vunpack.c.l.b16 %v316
    %v356 = vunpack.c.l.b16 %v317
    %v357 = vunpack.c.l.b16 %v318
    %v358 = vunpack.c.l.b16 %v319
    %v359 = vunpack.c.l.b16 %v320
    %v360 = vunpack.c.l.b16 %v321
    %v361 = vunpack.c.l.b16 %v322
    %v362 = vunpack.c.l.b16 %v323
    %v363 = vunpack.c.l.b16 %v324
    %v364 = vpack.c.b16 %v349, %v348
    %v365 = vpack.c.b16 %v351, %v350
    %v366 = vpack.c.b16 %v353, %v352
    %v367 = vpack.c.b16 %v355, %v354
    %v368 = vpack.c.b16 %v357, %v356
    %v369 = vpack.c.b16 %v359, %v358
    %v370 = vpack.c.b16 %v361, %v360
    %v371 = vpack.c.b16 %v363, %v362
    %380 = vmatprep.subr.bf16.mxu0 0
    %381 = vmatpush1.bf16.msra.mxu0 %v364
    %382 = vmatprep.subr.bf16.mxu0 0
    %383 = vmatpush1.bf16.msra.mxu0 %v365
    %384 = vmatprep.subr.bf16.mxu0 0
    %385 = vmatpush1.bf16.msra.mxu0 %v366
    %386 = vmatprep.subr.bf16.mxu0 0
    %387 = vmatpush1.bf16.msra.mxu0 %v367
    %388 = vmatprep.subr.bf16.mxu0 0
    %389 = vmatpush1.bf16.msra.mxu0 %v368
    %390 = vmatprep.subr.bf16.mxu0 0
    %391 = vmatpush1.bf16.msra.mxu0 %v369
    %392 = vmatprep.subr.bf16.mxu0 0
    %393 = vmatpush1.bf16.msra.mxu0 %v370
    %394 = vmatprep.subr.bf16.mxu0 0
    %395 = vmatpush1.bf16.msra.mxu0 %v371
    %396 = vmatprep.subr.bf16.mxu0 0
    %397 = vmatpush1.bf16.msra.mxu0 0
    %398 = vmatprep.subr.bf16.mxu0 0
    %399 = vmatpush1.bf16.msra.mxu0 0
    %400 = vmatprep.subr.bf16.mxu0 0
    %401 = vmatpush1.bf16.msra.mxu0 0
    %402 = vmatprep.subr.bf16.mxu0 0
    %403 = vmatpush1.bf16.msra.mxu0 0
    %404 = vmatprep.subr.bf16.mxu0 0
    %405 = vmatpush1.bf16.msra.mxu0 0
    %406 = vmatprep.subr.bf16.mxu0 0
    %407 = vmatpush1.bf16.msra.mxu0 0
    %408 = vmatprep.subr.bf16.mxu0 0
    %409 = vmatpush1.bf16.msra.mxu0 0
    %410 = vmatprep.subr.bf16.mxu0 0
    %411 = vmatpush1.bf16.msra.mxu0 0
    %412 = vmatprep.mubr.bf16.mxu0 0
    %413 = vmatmul.mubr.bf16.gmra.mrb[0].mxu0 %v308
    %v414 = vpop.f32.mrb[0].mxu0
    %v415 = vadd.f32 %v330, %v414
    %v416 = vpop.f32.mrb[0].mxu0
    %v417 = vpop.f32.mrb[0].mxu0
    %v418 = vpop.f32.mrb[0].mxu0
    %419 = vdwg.mxu0
    %v420 = vsub.f32 0.0, %v415
    %v421 = vmul.f32 %v420, 1.442695
    %v422 = vpow.pop %v421
    %v423 = vadd.f32 %v422, 1.0
    %v424 = vrcp.pop %v423
    %425 = vst [vmem:[#allocation10] sm:$0xff] %v424
    // Predicated region
    $region46: #{_ffn_forward.1} parent=1 // pred_check
      _
    $region47: #{_ffn_forward.1} parent=1 // pred_check_branch
      %427 = sbr.rel (0) target = $region49
    $region48: #{_ffn_forward.1} parent=1 // pred_region
      %s429 = ssub.s32 128, 128
      %430 = vsyncadd [#allocation4], %s429
      %s432 = sshll.u32 [#allocation10], 4
      %s433 = int_to_ptr.vmem [resolvable:$true] %s432
      %435 = dma.vmem_to_hbm [thread:$0]  %s433, 128, %s7, [#allocation4]
    $region49: #{_ffn_forward.1} parent=1 // pred_fallthru
      _
    // Predicated region
    $region50: #{_ffn_forward.1} parent=1 // pred_check
      _
    $region51: #{_ffn_forward.1} parent=1 // pred_check_branch
      %437 = sbr.rel (0) target = $region53
    $region52: #{_ffn_forward.1} parent=1 // pred_region
      %438 = dma.done [#allocation4], 128
    $region53: #{_ffn_forward.1} parent=1 // pred_fallthru
      _
    %439 = vsyncpa [#allocation3], 1
    %440 = vsyncpa [#allocation6], 1
    %441 = vsyncpa [#allocation9], 1
    %442 = vsyncpa [#allocation4], 1

</llo_original>
